<compile_context>
chip_gen: v6e
topology: v6e:2x2x1
jax: 0.10.0
libtpu: 0.0.40
codegen_flags: <defaults>
</compile_context>

<pallas_src>
import math

import jax
import jax.numpy as jnp
from jax.experimental import pallas as pl
from jax.experimental.pallas import tpu as pltpu


def _round_up(x: int, m: int) -> int:
    return (x + m - 1) // m * m


# --------------------------------------------------------------------------
# Pass 1: xa = x @ (A * alpha/r)^T        grid = (M tiles, K tiles)
# --------------------------------------------------------------------------
def _xa_kernel(x_ref, at_ref, xa_ref, acc_ref):
    """x_ref (tm,tk) bf16 · at_ref (tk,rp) bf16 -> xa_ref (tm,rp) bf16."""
    k = pl.program_id(1)

    @pl.when(k == 0)
    def _():
        acc_ref[...] = jnp.zeros_like(acc_ref)

    acc_ref[...] += jnp.dot(x_ref[...], at_ref[...],
                            preferred_element_type=jnp.float32)

    @pl.when(k == pl.num_programs(1) - 1)
    def _():
        xa_ref[...] = acc_ref[...].astype(xa_ref.dtype)


# --------------------------------------------------------------------------
# Pass 2: out = x @ W^T + b + xa @ B^T    grid = (M tiles, N tiles, K tiles)
# --------------------------------------------------------------------------
def _lora_linear_kernel(x_ref, wt_ref, b_ref, xa_ref, bt_ref, o_ref, acc_ref):
    """x (tm,tk) bf16, W^T (tk,tn) bf16, bias (1,tn) f32,
       xa (tm,rp) bf16, B^T (rp,tn) bf16, acc (tm,tn) f32."""
    k = pl.program_id(2)

    @pl.when(k == 0)
    def _():
        acc_ref[...] = jnp.zeros_like(acc_ref)

    acc_ref[...] += jnp.dot(x_ref[...], wt_ref[...],
                            preferred_element_type=jnp.float32)

    @pl.when(k == pl.num_programs(2) - 1)
    def _():
        lora = jnp.dot(xa_ref[...], bt_ref[...],
                       preferred_element_type=jnp.float32)
        o_ref[...] = (acc_ref[...] + b_ref[...] + lora).astype(o_ref.dtype)


# --------------------------------------------------------------------------
# Model-load-time preparation (do ONCE, cache the result).
# --------------------------------------------------------------------------
def prepare_lora_linear(weight, bias, lora_A, lora_B, *, r, lora_alpha,
                        tn=512, tk=1024, compute_dtype=jnp.bfloat16):
    """weight: (out, in), bias: (out,) or None, lora_A: (r, in), lora_B: (out, r)."""
    assert r > 0, "kernel implements the r > 0 (unmerged LoRA) path"
    out_features, in_features = weight.shape
    scaling = float(lora_alpha) / float(r)

    tk = min(tk, _round_up(in_features, 128))   # lane axis: multiple of 128
    tn = min(tn, _round_up(out_features, 128))
    rp = _round_up(max(r, 1), 128)              # padded LoRA rank (lane-dense)

    K_pad = _round_up(in_features, tk)
    N_pad = _round_up(out_features, tn)

    # Pretrained weight, [K, N] layout, bf16.
    w_t = weight.T
    if (in_features, out_features) != (K_pad, N_pad):
        w_t = jnp.pad(w_t, ((0, K_pad - in_features), (0, N_pad - out_features)))
    w_t = w_t.astype(compute_dtype)

    # Bias, f32 (zero bias if the Linear was built with bias=False).
    if bias is None:
        bias_p = jnp.zeros((N_pad,), jnp.float32)
    else:
        bias_p = bias.astype(jnp.float32)
        if out_features != N_pad:
            bias_p = jnp.pad(bias_p, (0, N_pad - out_features))
    bias_p = bias_p.reshape(1, N_pad)

    # alpha/r folded into A once; [K, r] layout, bf16.
    a_t = (lora_A * scaling).T
    if (in_features, r) != (K_pad, rp):
        a_t = jnp.pad(a_t, ((0, K_pad - in_features), (0, rp - r)))
    a_t = a_t.astype(compute_dtype)

    # B^T, [r, N] layout, bf16 so the finalize matmul is a native bf16 MXU op.
    b_t = lora_B.T
    if (r, out_features) != (rp, N_pad):
        b_t = jnp.pad(b_t, ((0, rp - r), (0, N_pad - out_features)))
    b_t = b_t.astype(compute_dtype)

    return dict(w_t=w_t, bias_p=bias_p, a_t=a_t, b_t=b_t,
                in_features=in_features, out_features=out_features,
                K_pad=K_pad, N_pad=N_pad, rp=rp, tk=tk, tn=tn,
                compute_dtype=compute_dtype)


# --------------------------------------------------------------------------
# Per-call forward (x varies; weights are the cached prepared params).
# --------------------------------------------------------------------------
def lora_linear_apply(params, x, *, tm=512, out_dtype=None):
    """x: (..., in_features) -> (..., out_features)."""
    in_features = params["in_features"]
    out_features = params["out_features"]
    K_pad, N_pad, rp = params["K_pad"], params["N_pad"], params["rp"]
    tk, tn = params["tk"], params["tn"]
    compute_dtype = params["compute_dtype"]
    out_dtype = x.dtype if out_dtype is None else out_dtype

    orig_shape = x.shape
    x2d = x.reshape(-1, in_features)
    M = x2d.shape[0]

    tm = min(tm, _round_up(M, 8))               # sublane axis: multiple of 8
    M_pad = _round_up(M, tm)

    x_p = x2d
    if (M, in_features) != (M_pad, K_pad):      # skip pad if already aligned
        x_p = jnp.pad(x_p, ((0, M_pad - M), (0, K_pad - in_features)))
    x_p = x_p.astype(compute_dtype)

    grid_m = M_pad // tm
    grid_n = N_pad // tn
    grid_k = K_pad // tk

    # --- Pass 1: low-rank projection, computed once per M tile (hoisted) ---
    xa = pl.pallas_call(
        _xa_kernel,
        out_shape=jax.ShapeDtypeStruct((M_pad, rp), compute_dtype),
        grid_spec=pltpu.PrefetchScalarGridSpec(
            num_scalar_prefetch=0,
            grid=(grid_m, grid_k),
            in_specs=[
                pl.BlockSpec((tm, tk), lambda i, k: (i, k)),   # x
                pl.BlockSpec((tk, rp), lambda i, k: (k, 0)),   # A_scaled^T (K,r)
            ],
            out_specs=pl.BlockSpec((tm, rp), lambda i, k: (i, 0)),
            scratch_shapes=[pltpu.VMEM((tm, rp), jnp.float32)],
        ),
        compiler_params=pltpu.CompilerParams(
            dimension_semantics=("parallel", "arbitrary")),
    )(x_p, params["a_t"])

    # --- Pass 2: main matmul + bias + LoRA finalize ---
    out_padded = pl.pallas_call(
        _lora_linear_kernel,
        out_shape=jax.ShapeDtypeStruct((M_pad, N_pad), out_dtype),
        grid_spec=pltpu.PrefetchScalarGridSpec(
            num_scalar_prefetch=0,
            grid=(grid_m, grid_n, grid_k),
            in_specs=[
                pl.BlockSpec((tm, tk), lambda i, j, k: (i, k)),   # x
                pl.BlockSpec((tk, tn), lambda i, j, k: (k, j)),   # W^T (K,N)
                pl.BlockSpec((1, tn), lambda i, j, k: (0, j)),    # bias
                pl.BlockSpec((tm, rp), lambda i, j, k: (i, 0)),   # xa (M,r)
                pl.BlockSpec((rp, tn), lambda i, j, k: (0, j)),   # B^T (r,N)
            ],
            out_specs=pl.BlockSpec((tm, tn), lambda i, j, k: (i, j)),
            scratch_shapes=[pltpu.VMEM((tm, tn), jnp.float32)],
        ),
        compiler_params=pltpu.CompilerParams(
            dimension_semantics=("parallel", "parallel", "arbitrary")),
    )(x_p, params["w_t"], params["bias_p"], xa, params["b_t"])

    out2d = out_padded
    if (M_pad, N_pad) != (M, out_features):     # skip slice if already aligned
        out2d = out2d[:M, :out_features]
    return out2d.reshape(*orig_shape[:-1], out_features)


def lora_linear(x, weight, bias, lora_A, lora_B, *, r, lora_alpha, **kw):
    """One-shot convenience wrapper (prepares weights per call; prefer
    prepare_lora_linear + lora_linear_apply to cache the weight layout)."""
    params = prepare_lora_linear(weight, bias, lora_A, lora_B,
                                 r=r, lora_alpha=lora_alpha)
    return lora_linear_apply(params, x, **kw)


if __name__ == "__main__":
    # Small shapes consistent with the module's forward.
    batch, seq = 2, 8
    in_features, out_features, r, lora_alpha = 32, 32, 4, 8

    key = jax.random.PRNGKey(0)
    kx, kw, kb, ka, kbb = jax.random.split(key, 5)

    x = jax.random.normal(kx, (batch, seq, in_features), dtype=jnp.float32)

    # Deterministic parameter init (PyTorch-style bounds).
    w_bound = 1.0 / math.sqrt(in_features)
    weight = jax.random.uniform(kw, (out_features, in_features),
                                minval=-w_bound, maxval=w_bound,
                                dtype=jnp.float32)
    bias = jax.random.uniform(kb, (out_features,),
                              minval=-w_bound, maxval=w_bound,
                              dtype=jnp.float32)
    # kaiming_uniform_(a=sqrt(5)) bound for lora_A = 1/sqrt(in_features).
    a_bound = 1.0 / math.sqrt(in_features)
    lora_A = jax.random.uniform(ka, (r, in_features),
                                minval=-a_bound, maxval=a_bound,
                                dtype=jnp.float32)
    # NOTE: the module zero-inits lora_B; we init it randomly (deterministic)
    # so the LoRA branch of the kernel is actually exercised.
    lora_B = jax.random.uniform(kbb, (out_features, r),
                                minval=-a_bound, maxval=a_bound,
                                dtype=jnp.float32)

    # Model-load-time weight preparation (cached), then per-call apply.
    params = prepare_lora_linear(weight, bias, lora_A, lora_B,
                                 r=r, lora_alpha=lora_alpha)
    out = lora_linear_apply(params, x)
    out = jax.block_until_ready(out)

    # Pure-JAX reference mirroring the kernel's numerics:
    # bf16 operands (x, W, scaled A, B, xa) with f32 MXU accumulation.
    scaling = lora_alpha / r
    x2 = x.reshape(-1, in_features)
    xf = x2.astype(jnp.bfloat16)
    wf = weight.astype(jnp.bfloat16)
    af = (lora_A * scaling).astype(jnp.bfloat16)
    bf = lora_B.astype(jnp.bfloat16)
    pretrained = jnp.dot(xf, wf.T, preferred_element_type=jnp.float32) + bias
    xa_ref = jnp.dot(xf, af.T,
                     preferred_element_type=jnp.float32).astype(jnp.bfloat16)
    lora_ref = jnp.dot(xa_ref, bf.T, preferred_element_type=jnp.float32)
    ref = (pretrained + lora_ref).reshape(batch, seq, out_features).astype(x.dtype)

    assert out.shape == (batch, seq, out_features)
    assert jnp.allclose(out, ref, atol=5e-3, rtol=5e-3), "mismatch vs reference"

    print("KERNEL_OK")
</pallas_src>

<mosaic_0001>
module attributes {stable_mosaic.version = 11 : i64} {
  func.func @_xa_kernel(%arg0: i32, %arg1: i32, %arg2: memref<16x128xbf16, #tpu.memory_space<vmem>>, %arg3: memref<128x128xbf16, #tpu.memory_space<vmem>>, %arg4: memref<16x128xbf16, #tpu.memory_space<vmem>>, %arg5: memref<16x128xf32, #tpu.memory_space<vmem>>) attributes {dimension_semantics = [#tpu.dimension_semantics<parallel>, #tpu.dimension_semantics<arbitrary>], iteration_bounds = array<i64: 1, 1>, scalar_prefetch = 0 : i64, scratch_operands = 1 : i64, tpu.core_type = #tpu.core_type<tc>, window_params = [{transform_indices = @transform_0, window_bounds = array<i64: 16, 128>}, {transform_indices = @transform_1, window_bounds = array<i64: 128, 128>}, {transform_indices = @transform_2, window_bounds = array<i64: 16, 128>}]} {
    %c0_i32 = arith.constant 0 : i32
    %0 = arith.cmpi eq, %arg1, %c0_i32 : i32
    %1 = arith.extui %0 : i1 to i32
    %c0_i32_0 = arith.constant 0 : i32
    %2 = arith.cmpi ne, %1, %c0_i32_0 : i32
    scf.if %2 {
      %cst_10 = arith.constant 0.000000e+00 : f32
      %12 = vector.broadcast %cst_10 : f32 to vector<16x128xf32>
      %c0_11 = arith.constant 0 : index
      %c0_12 = arith.constant 0 : index
      %13 = vector.load %arg5[%c0_11, %c0_12] : memref<16x128xf32, #tpu.memory_space<vmem>>, vector<16x128xf32>
      tpu.vector_store %arg5[%c0_11, %c0_12], %12 {strides = array<i32>} : memref<16x128xf32, #tpu.memory_space<vmem>>, vector<16x128xf32>,
    } else {
    }
    %c0 = arith.constant 0 : index
    %c0_1 = arith.constant 0 : index
    %3 = vector.load %arg5[%c0, %c0_1] : memref<16x128xf32, #tpu.memory_space<vmem>>, vector<16x128xf32>
    %c0_2 = arith.constant 0 : index
    %c0_3 = arith.constant 0 : index
    %4 = vector.load %arg2[%c0_2, %c0_3] : memref<16x128xbf16, #tpu.memory_space<vmem>>, vector<16x128xbf16>
    %c0_4 = arith.constant 0 : index
    %c0_5 = arith.constant 0 : index
    %5 = vector.load %arg3[%c0_4, %c0_5] : memref<128x128xbf16, #tpu.memory_space<vmem>>, vector<128x128xbf16>
    %cst = arith.constant dense<0.000000e+00> : vector<16x128xf32>
    %6 = tpu.matmul %4, %5, %cst {dimension_numbers = #tpu.dot_dimension_numbers<[1], [0], [0], [1], [0, 0, 1, 1], [], []>} : vector<16x128xbf16>, vector<128x128xbf16>, vector<16x128xf32> -> vector<16x128xf32>
    %7 = arith.addf %3, %6 : vector<16x128xf32>
    %c0_6 = arith.constant 0 : index
    %c0_7 = arith.constant 0 : index
    %8 = vector.load %arg5[%c0_6, %c0_7] : memref<16x128xf32, #tpu.memory_space<vmem>>, vector<16x128xf32>
    tpu.vector_store %arg5[%c0_6, %c0_7], %7 {strides = array<i32>} : memref<16x128xf32, #tpu.memory_space<vmem>>, vector<16x128xf32>,
    %c0_i32_8 = arith.constant 0 : i32
    %9 = arith.cmpi eq, %arg1, %c0_i32_8 : i32
    %10 = arith.extui %9 : i1 to i32
    %c0_i32_9 = arith.constant 0 : i32
    %11 = arith.cmpi ne, %10, %c0_i32_9 : i32
    scf.if %11 {
      %c0_10 = arith.constant 0 : index
      %c0_11 = arith.constant 0 : index
      %12 = vector.load %arg5[%c0_10, %c0_11] : memref<16x128xf32, #tpu.memory_space<vmem>>, vector<16x128xf32>
      %13 = arith.truncf %12 : vector<16x128xf32> to vector<16x128xbf16>
      %c0_12 = arith.constant 0 : index
      %c0_13 = arith.constant 0 : index
      %14 = vector.load %arg4[%c0_12, %c0_13] : memref<16x128xbf16, #tpu.memory_space<vmem>>, vector<16x128xbf16>
      tpu.vector_store %arg4[%c0_12, %c0_13], %13 {strides = array<i32>} : memref<16x128xbf16, #tpu.memory_space<vmem>>, vector<16x128xbf16>,
    } else {
    }
    return
  }
  func.func @transform_0(%arg0: i32, %arg1: i32) -> (i32, i32) {
    %c0_i32 = arith.constant 0 : i32
    return %arg0, %arg1 : i32, i32
  }
  func.func @transform_1(%arg0: i32, %arg1: i32) -> (i32, i32) {
    %c0_i32 = arith.constant 0 : i32
    %c0_i32_0 = arith.constant 0 : i32
    return %arg1, %c0_i32 : i32, i32
  }
  func.func @transform_2(%arg0: i32, %arg1: i32) -> (i32, i32) {
    %c0_i32 = arith.constant 0 : i32
    %c0_i32_0 = arith.constant 0 : i32
    return %arg0, %c0_i32 : i32, i32
  }
}

</mosaic_0001>

<llo_original>
// kernel: tpu_custom_call.1
$region0: #{tpu_custom_call.1}
  #allocation0 [shape = 'u32[]', space=smem, size = 0x4, offset = 0x4, fixed_abs, tag = 'smem constant byte address 0x4 - core index']
  #allocation1 [shape = 'u32[144,128]{1,0:T(1,128)}', space=vmem, size = 0x12000, scoped, tag = 'internal scratch']
  #allocation2 [shape = 'f32[16,128]{1,0:T(8,128)}', space=vmem, size = 0x2000, scoped, tag = 'scratch operand']
  %s0 = inlined_call_operand.hbm [shape: bf16[16,128], index: 0, kind: input, shape index: {}]
  %s1 = inlined_call_operand.hbm [shape: bf16[128,128], index: 1, kind: input, shape index: {}]
  %s2 = inlined_call_operand.hbm [shape: bf16[16,128], index: 2, kind: output, shape index: {}]
  %s3 = sld [smem:[#allocation0]]
  $region34: #{tpu_custom_call.1} parent=0
    _
  %s5 = ssub.s32 1, %s3
  %s6 = scalar_select 0, %s5, %s3
  $region1: #{tpu_custom_call.1} parent=0
    #allocation3 [shape = 'u8[4096]{0}', space=vmem, size = 0x1000, scoped, tag = 'input window, operand 0, single buffered']
    #allocation4 [shape = 's32[1]{0}', space=sflag, size = 0x4, scoped, tag = 'scoped memory for tpu_custom_call.1']
    #allocation5 [shape = 's32[1]{0}', space=sflag, size = 0x4, scoped, tag = 'scoped memory for tpu_custom_call.1']
    #allocation6 [shape = 'u8[32768]{0}', space=vmem, size = 0x8000, scoped, tag = 'input window, operand 1, single buffered']
    #allocation7 [shape = 's32[1]{0}', space=sflag, size = 0x4, scoped, tag = 'scoped memory for tpu_custom_call.1']
    #allocation8 [shape = 'u8[4096]{0}', space=vmem, size = 0x1000, scoped, tag = 'output window, operand 0, single buffered']
    %7 = vsyncpa [#allocation4], 0
    %8 = vsyncpa [#allocation7], 0
    %9 = vsyncpa [#allocation5], 0
    // Predicated region
    $region2: #{tpu_custom_call.1} parent=1 // pred_check
      _
    $region3: #{tpu_custom_call.1} parent=1 // pred_check_branch
      %11 = sbr.rel (0) target = $region5
    $region4: #{tpu_custom_call.1} parent=1 // pred_region
      %s13 = ssub.s32 128, 128
      %14 = vsyncadd [#allocation4], %s13
      %s15 = sshll.u32 [#allocation3], 4
      %s16 = int_to_ptr.vmem [resolvable:$true] %s15
      %21 = dma.hbm_to_vmem [thread:$0]  %s0, 128, %s16, [#allocation4], 64, 64, 4
    $region5: #{tpu_custom_call.1} parent=1 // pred_fallthru
      _
    // Predicated region
    $region6: #{tpu_custom_call.1} parent=1 // pred_check
      _
    $region7: #{tpu_custom_call.1} parent=1 // pred_check_branch
      %23 = sbr.rel (0) target = $region9
    $region8: #{tpu_custom_call.1} parent=1 // pred_region
      %s25 = ssub.s32 1024, 1024
      %26 = vsyncadd [#allocation7], %s25
      %s27 = sshll.u32 [#allocation6], 4
      %s28 = int_to_ptr.vmem [resolvable:$true] %s27
      %33 = dma.hbm_to_vmem [thread:$0]  %s1, 1024, %s28, [#allocation7], 64, 64, 4
    $region9: #{tpu_custom_call.1} parent=1 // pred_fallthru
      _
    // Predicated region
    $region10: #{tpu_custom_call.1} parent=1 // pred_check
      _
    $region11: #{tpu_custom_call.1} parent=1 // pred_check_branch
      %35 = sbr.rel (0) target = $region13
    $region12: #{tpu_custom_call.1} parent=1 // pred_region
      %36 = dma.done [#allocation4], 128
    $region13: #{tpu_custom_call.1} parent=1 // pred_fallthru
      _
    // Predicated region
    $region14: #{tpu_custom_call.1} parent=1 // pred_check
      _
    $region15: #{tpu_custom_call.1} parent=1 // pred_check_branch
      %38 = sbr.rel (0) target = $region17
    $region16: #{tpu_custom_call.1} parent=1 // pred_region
      %39 = dma.done [#allocation7], 1024
    $region17: #{tpu_custom_call.1} parent=1 // pred_fallthru
      _
    %p41 = scmp.eq.s32.totalorder 0, 0
    // Predicated region
    $region18: #{tpu_custom_call.1} parent=1 // pred_check
      %p42 = pneg %p41
    $region19: #{tpu_custom_call.1} parent=1 // pred_check_branch
      %44 = sbr.rel (%p42) target = $region21
    $region20: #{tpu_custom_call.1} parent=1 // pred_region
      %45 = vst [vmem:[#allocation2] sm:$0xff] 0.0
      %46 = vst [vmem:[#allocation2 + $0x8] sm:$0xff] 0.0
    $region21: #{tpu_custom_call.1} parent=1 // pred_fallthru
      _
    %v47 = vld [vmem:[#allocation2] sm:$0xff]
    %v48 = vld [vmem:[#allocation2 + $0x8] sm:$0xff]
    %v49 = vld [vmem:[#allocation3] sm:$0xf]
    %v50 = vld [vmem:[#allocation3 + $0x4] sm:$0xf]
    %v51 = vld [vmem:[#allocation6] sm:$0xf]
    %v52 = vld [vmem:[#allocation6 + $0x4] sm:$0xf]
    %v53 = vld [vmem:[#allocation6 + $0x8] sm:$0xf]
    %v54 = vld [vmem:[#allocation6 + $0xc] sm:$0xf]
    %v55 = vld [vmem:[#allocation6 + $0x10] sm:$0xf]
    %v56 = vld [vmem:[#allocation6 + $0x14] sm:$0xf]
    %v57 = vld [vmem:[#allocation6 + $0x18] sm:$0xf]
    %v58 = vld [vmem:[#allocation6 + $0x1c] sm:$0xf]
    %v59 = vld [vmem:[#allocation6 + $0x20] sm:$0xf]
    %v60 = vld [vmem:[#allocation6 + $0x24] sm:$0xf]
    %v61 = vld [vmem:[#allocation6 + $0x28] sm:$0xf]
    %v62 = vld [vmem:[#allocation6 + $0x2c] sm:$0xf]
    %v63 = vld [vmem:[#allocation6 + $0x30] sm:$0xf]
    %v64 = vld [vmem:[#allocation6 + $0x34] sm:$0xf]
    %v65 = vld [vmem:[#allocation6 + $0x38] sm:$0xf]
    %v66 = vld [vmem:[#allocation6 + $0x3c] sm:$0xf]
    %v69 = vunpack.c.l.b16 %v49
    %v70 = vunpack.c.l.b16 %v50
    %v71 = vpack.c.b16 %v70, %v69
    %v89 = vunpack.c.l.b16 %v51
    %v90 = vunpack.c.l.b16 %v52
    %v91 = vunpack.c.l.b16 %v53
    %v92 = vunpack.c.l.b16 %v54
    %v93 = vunpack.c.l.b16 %v55
    %v94 = vunpack.c.l.b16 %v56
    %v95 = vunpack.c.l.b16 %v57
    %v96 = vunpack.c.l.b16 %v58
    %v97 = vunpack.c.l.b16 %v59
    %v98 = vunpack.c.l.b16 %v60
    %v99 = vunpack.c.l.b16 %v61
    %v100 = vunpack.c.l.b16 %v62
    %v101 = vunpack.c.l.b16 %v63
    %v102 = vunpack.c.l.b16 %v64
    %v103 = vunpack.c.l.b16 %v65
    %v104 = vunpack.c.l.b16 %v66
    %v105 = vpack.c.b16 %v90, %v89
    %v106 = vpack.c.b16 %v92, %v91
    %v107 = vpack.c.b16 %v94, %v93
    %v108 = vpack.c.b16 %v96, %v95
    %v109 = vpack.c.b16 %v98, %v97
    %v110 = vpack.c.b16 %v100, %v99
    %v111 = vpack.c.b16 %v102, %v101
    %v112 = vpack.c.b16 %v104, %v103
    %121 = vmatprep.subr.bf16.mxu0 0
    %122 = vmatpush1.bf16.msra.mxu0 %v112
    %123 = vmatprep.subr.bf16.mxu0 0
    %124 = vmatpush1.bf16.msra.mxu0 %v111
    %125 = vmatprep.subr.bf16.mxu0 0
    %126 = vmatpush1.bf16.msra.mxu0 %v110
    %127 = vmatprep.subr.bf16.mxu0 0
    %128 = vmatpush1.bf16.msra.mxu0 %v109
    %129 = vmatprep.subr.bf16.mxu0 0
    %130 = vmatpush1.bf16.msra.mxu0 %v108
    %131 = vmatprep.subr.bf16.mxu0 0
    %132 = vmatpush1.bf16.msra.mxu0 %v107
    %133 = vmatprep.subr.bf16.mxu0 0
    %134 = vmatpush1.bf16.msra.mxu0 %v106
    %135 = vmatprep.subr.bf16.mxu0 0
    %136 = vmatpush1.bf16.msra.mxu0 %v105
    %137 = vmatprep.subr.bf16.mxu0 0
    %138 = vmatpush2.bf16.msra.mxu0 0
    %139 = vmatprep.subr.bf16.mxu0 0
    %140 = vmatpush2.bf16.msra.mxu0 0
    %141 = vmatprep.subr.bf16.mxu0 0
    %142 = vmatpush2.bf16.msra.mxu0 0
    %143 = vmatprep.subr.bf16.mxu0 0
    %144 = vmatpush2.bf16.msra.mxu0 0
    %145 = vmatprep.subr.bf16.mxu0 0
    %146 = vmatpush2.bf16.msra.mxu0 0
    %147 = vmatprep.subr.bf16.mxu0 0
    %148 = vmatpush2.bf16.msra.mxu0 0
    %149 = vmatprep.subr.bf16.mxu0 0
    %150 = vmatpush2.bf16.msra.mxu0 0
    %151 = vmatprep.subr.bf16.mxu0 0
    %152 = vmatpush2.bf16.msra.mxu0 0
    %153 = vmatprep.mubr.bf16.mxu0 0
    %154 = vmatmul.mubr.bf16.gmra.mxu0 %v71
    %v155 = vpop.f32.mrf.mxu0
    %v156 = vadd.f32 0.0, %v155
    %v157 = vpop.f32.mrf.mxu0
    %v158 = vpop.f32.mrf.mxu0
    %v159 = vadd.f32 0.0, %v158
    %v160 = vpop.f32.mrf.mxu0
    %161 = vdwg.mxu0
    %v162 = vadd.f32 %v47, %v156
    %v163 = vadd.f32 %v48, %v159
    %164 = vst [vmem:[#allocation2] sm:$0xff] %v162
    %165 = vst [vmem:[#allocation2 + $0x8] sm:$0xff] %v163
    // Predicated region
    $region22: #{tpu_custom_call.1} parent=1 // pred_check
      %p166 = pneg %p41
    $region23: #{tpu_custom_call.1} parent=1 // pred_check_branch
      %168 = sbr.rel (%p166) target = $region25
    $region24: #{tpu_custom_call.1} parent=1 // pred_region
      %v169 = vld [vmem:[#allocation2] sm:$0xff]
      %v170 = vld [vmem:[#allocation2 + $0x8] sm:$0xff]
      %v171 = vpack.c.bf16 %v170, %v169
      %v173 = vunpack.c.l.b16 %v171
      %v174 = vunpack.c.h.b16 %v171
      %v175 = vpack.c.b16 %v173, %v173
      %v176 = vpack.c.b16 %v174, %v174
      %179 = vst [vmem:[#allocation8] sm:$0xf] %v175
      %180 = vst [vmem:[#allocation8 + $0x4] sm:$0xf] %v176
    $region25: #{tpu_custom_call.1} parent=1 // pred_fallthru
      _
    // Predicated region
    $region26: #{tpu_custom_call.1} parent=1 // pred_check
      _
    $region27: #{tpu_custom_call.1} parent=1 // pred_check_branch
      %182 = sbr.rel (0) target = $region29
    $region28: #{tpu_custom_call.1} parent=1 // pred_region
      %s184 = ssub.s32 128, 128
      %185 = vsyncadd [#allocation5], %s184
      %s186 = sshll.u32 [#allocation8], 4
      %s187 = int_to_ptr.vmem [resolvable:$true] %s186
      %192 = dma.vmem_to_hbm [thread:$0]  %s187, 128, %s2, [#allocation5], 64, 64, 4
    $region29: #{tpu_custom_call.1} parent=1 // pred_fallthru
      _
    // Predicated region
    $region30: #{tpu_custom_call.1} parent=1 // pred_check
      _
    $region31: #{tpu_custom_call.1} parent=1 // pred_check_branch
      %194 = sbr.rel (0) target = $region33
    $region32: #{tpu_custom_call.1} parent=1 // pred_region
      %195 = dma.done [#allocation5], 128
    $region33: #{tpu_custom_call.1} parent=1 // pred_fallthru
      _
    %196 = vsyncpa [#allocation4], 1
    %197 = vsyncpa [#allocation7], 1
    %198 = vsyncpa [#allocation5], 1

</llo_original>
